<compile_context>
chip_gen: v5e
topology: v5e:2x2
jax: 0.10.0
libtpu: 0.0.40
codegen_flags: <defaults>
</compile_context>

<pallas_src>
import jax
import jax.numpy as jnp
from jax.experimental import pallas as pl
from jax.experimental.pallas import tpu as pltpu


def _conv1x1_hardsigmoid_kernel(x_ref, w_ref, b3_ref, o_ref):
    """x_ref:  (N, Cin, HW)   VMEM (lane-dense spatial axis)
       w_ref:  (Cout, Cin)    VMEM (tiny tile)
       b3_ref: (Cout, 1)      VMEM (holds bias + 3)
       o_ref:  (N, Cout, HW)  VMEM."""
    cin = x_ref.shape[1]

    x = x_ref[...]                               # (N, Cin, HW)
    w = w_ref[...]                               # (Cout, Cin)
    b3 = b3_ref[...]                             # (Cout, 1)

    acc = b3[None, :, :]                         # (1, Cout, 1) -> broadcasts
    for ci in range(cin):                        # Cin = 3 -> static unroll, VPU FMAs
        xi = x[:, ci:ci + 1, :]                  # (N, 1, HW)  sublane-broadcast
        wi = w[:, ci:ci + 1][None, :, :]         # (1, Cout, 1) lane-broadcast
        acc = acc + xi * wi                      # (N, Cout, HW)

    acc = jnp.minimum(jnp.maximum(acc, 0.0), 6.0) * (1.0 / 6.0)
    o_ref[...] = acc.astype(o_ref.dtype)         # one full, unmasked block store


def conv1x1_hardsigmoid(x_nchw, weight, bias, padding=1):
    """x_nchw: (N, Cin, H, W); weight: (Cout, Cin, 1, 1); bias: (Cout,)."""
    N, Cin, H, W = x_nchw.shape
    Cout = weight.shape[0]
    Hp, Wp = H + 2 * padding, W + 2 * padding
    HW = Hp * Wp

    # Tiny spatial zero-pad (single XLA op on a KB-sized tensor); the following
    # reshape NCHW -> (N, Cin, Hp*Wp) is layout-free (no transpose).
    xp = jnp.pad(x_nchw, ((0, 0), (0, 0), (padding, padding), (padding, padding)))
    x_flat = xp.reshape(N, Cin, HW).astype(jnp.float32)

    w2d = weight.reshape(Cout, Cin).astype(jnp.float32)
    b3 = (bias.astype(jnp.float32) + 3.0).reshape(Cout, 1)   # fold the "+3"

    out_flat = pl.pallas_call(
        _conv1x1_hardsigmoid_kernel,
        out_shape=jax.ShapeDtypeStruct((N, Cout, HW), x_nchw.dtype),
        grid=(1,),                                            # single step: whole batch
        in_specs=[
            pl.BlockSpec((N, Cin, HW), lambda i: (0, 0, 0)),
            pl.BlockSpec((Cout, Cin), lambda i: (0, 0)),
            pl.BlockSpec((Cout, 1), lambda i: (0, 0)),
        ],
        out_specs=pl.BlockSpec((N, Cout, HW), lambda i: (0, 0, 0)),
        compiler_params=pltpu.CompilerParams(
            dimension_semantics=("arbitrary",)),
    )(x_flat, w2d, b3)

    # Free reshape back to padded NCHW: (N, Cout, Hp, Wp).
    return out_flat.reshape(N, Cout, Hp, Wp)


if __name__ == "__main__":
    key = jax.random.PRNGKey(0)
    k_x, k_w, k_b = jax.random.split(key, 3)

    # Small shapes consistent with the module: batch=2, Cin=3, spatial=16, Cout=8.
    N, Cin, H, W = 2, 3, 16, 16
    Cout = 8

    x = jax.random.normal(k_x, (N, Cin, H, W), dtype=jnp.float32)
    bound = 1.0 / (Cin ** 0.5)
    weight = jax.random.uniform(k_w, (Cout, Cin, 1, 1), minval=-bound,
                                maxval=bound, dtype=jnp.float32)
    bias = jax.random.uniform(k_b, (Cout,), minval=-bound, maxval=bound,
                              dtype=jnp.float32)

    out = conv1x1_hardsigmoid(x, weight, bias, padding=1)
    out = jax.block_until_ready(out)
    assert out.shape == (N, Cout, H + 2, W + 2)

    # Lightweight pure-JAX correctness check.
    xp = jnp.pad(x, ((0, 0), (0, 0), (1, 1), (1, 1)))
    w2 = weight.reshape(Cout, Cin)
    ref = (xp[:, None] * w2[None, :, :, None, None]).sum(axis=2)
    ref = ref + bias[None, :, None, None]
    ref = jnp.clip(ref + 3.0, 0.0, 6.0) / 6.0
    assert jnp.allclose(out, ref, atol=1e-5, rtol=1e-5)

    print("KERNEL_OK")
</pallas_src>

<mosaic_0001>
module attributes {stable_mosaic.version = 11 : i64} {
  func.func @_conv1x1_hardsigmoid_kernel(%arg0: i32, %arg1: memref<2x3x324xf32, #tpu.memory_space<vmem>>, %arg2: memref<8x3xf32, #tpu.memory_space<vmem>>, %arg3: memref<8x1xf32, #tpu.memory_space<vmem>>, %arg4: memref<2x8x324xf32, #tpu.memory_space<vmem>>) attributes {dimension_semantics = [#tpu.dimension_semantics<arbitrary>], iteration_bounds = array<i64: 1>, scalar_prefetch = 0 : i64, scratch_operands = 0 : i64, tpu.core_type = #tpu.core_type<tc>, window_params = [{pipeline_mode = #tpu.pipeline_mode<synchronous>, transform_indices = @transform_0, window_bounds = array<i64: 2, 3, 324>}, {pipeline_mode = #tpu.pipeline_mode<synchronous>, transform_indices = @transform_1, window_bounds = array<i64: 8, 3>}, {pipeline_mode = #tpu.pipeline_mode<synchronous>, transform_indices = @transform_2, window_bounds = array<i64: 8, 1>}, {pipeline_mode = #tpu.pipeline_mode<synchronous>, transform_indices = @transform_3, window_bounds = array<i64: 2, 8, 324>}]} {
    %c0 = arith.constant 0 : index
    %c0_0 = arith.constant 0 : index
    %c0_1 = arith.constant 0 : index
    %0 = vector.load %arg1[%c0, %c0_0, %c0_1] : memref<2x3x324xf32, #tpu.memory_space<vmem>>, vector<2x3x324xf32>
    %c0_2 = arith.constant 0 : index
    %c0_3 = arith.constant 0 : index
    %1 = vector.load %arg2[%c0_2, %c0_3] : memref<8x3xf32, #tpu.memory_space<vmem>>, vector<8x3xf32>
    %c0_4 = arith.constant 0 : index
    %c0_5 = arith.constant 0 : index
    %2 = vector.load %arg3[%c0_4, %c0_5] : memref<8x1xf32, #tpu.memory_space<vmem>>, vector<8x1xf32>
    %3 = vector.shape_cast %2 : vector<8x1xf32> to vector<1x8x1xf32>
    %4 = vector.extract_strided_slice %0 {offsets = [0, 0, 0], sizes = [2, 1, 324], strides = [1, 1, 1]} : vector<2x3x324xf32> to vector<2x1x324xf32>
    %5 = vector.extract_strided_slice %1 {offsets = [0, 0], sizes = [8, 1], strides = [1, 1]} : vector<8x3xf32> to vector<8x1xf32>
    %6 = vector.shape_cast %5 : vector<8x1xf32> to vector<1x8x1xf32>
    %7 = vector.broadcast %4 : vector<2x1x324xf32> to vector<2x8x324xf32>
    %8 = vector.broadcast %6 : vector<1x8x1xf32> to vector<2x8x324xf32>
    %9 = arith.mulf %7, %8 : vector<2x8x324xf32>
    %10 = vector.broadcast %3 : vector<1x8x1xf32> to vector<2x8x324xf32>
    %11 = arith.addf %10, %9 : vector<2x8x324xf32>
    %12 = vector.extract_strided_slice %0 {offsets = [0, 1, 0], sizes = [2, 1, 324], strides = [1, 1, 1]} : vector<2x3x324xf32> to vector<2x1x324xf32>
    %13 = vector.extract_strided_slice %1 {offsets = [0, 1], sizes = [8, 1], strides = [1, 1]} : vector<8x3xf32> to vector<8x1xf32>
    %14 = vector.shape_cast %13 : vector<8x1xf32> to vector<1x8x1xf32>
    %15 = vector.broadcast %12 : vector<2x1x324xf32> to vector<2x8x324xf32>
    %16 = vector.broadcast %14 : vector<1x8x1xf32> to vector<2x8x324xf32>
    %17 = arith.mulf %15, %16 : vector<2x8x324xf32>
    %18 = arith.addf %11, %17 : vector<2x8x324xf32>
    %19 = vector.extract_strided_slice %0 {offsets = [0, 2, 0], sizes = [2, 1, 324], strides = [1, 1, 1]} : vector<2x3x324xf32> to vector<2x1x324xf32>
    %20 = vector.extract_strided_slice %1 {offsets = [0, 2], sizes = [8, 1], strides = [1, 1]} : vector<8x3xf32> to vector<8x1xf32>
    %21 = vector.shape_cast %20 : vector<8x1xf32> to vector<1x8x1xf32>
    %22 = vector.broadcast %19 : vector<2x1x324xf32> to vector<2x8x324xf32>
    %23 = vector.broadcast %21 : vector<1x8x1xf32> to vector<2x8x324xf32>
    %24 = arith.mulf %22, %23 : vector<2x8x324xf32>
    %25 = arith.addf %18, %24 : vector<2x8x324xf32>
    %cst = arith.constant 0.000000e+00 : f32
    %26 = vector.broadcast %cst : f32 to vector<2x8x324xf32>
    %27 = arith.maximumf %25, %26 : vector<2x8x324xf32>
    %cst_6 = arith.constant 6.000000e+00 : f32
    %28 = vector.broadcast %cst_6 : f32 to vector<2x8x324xf32>
    %29 = arith.minimumf %27, %28 : vector<2x8x324xf32>
    %cst_7 = arith.constant 0.166666672 : f32
    %30 = vector.broadcast %cst_7 : f32 to vector<2x8x324xf32>
    %31 = arith.mulf %29, %30 : vector<2x8x324xf32>
    %c0_8 = arith.constant 0 : index
    %c0_9 = arith.constant 0 : index
    %c0_10 = arith.constant 0 : index
    %32 = vector.load %arg4[%c0_8, %c0_9, %c0_10] : memref<2x8x324xf32, #tpu.memory_space<vmem>>, vector<2x8x324xf32>
    tpu.vector_store %arg4[%c0_8, %c0_9, %c0_10], %31 {strides = array<i32>} : memref<2x8x324xf32, #tpu.memory_space<vmem>>, vector<2x8x324xf32>,
    return
  }
  func.func @transform_0(%arg0: i32) -> (i32, i32, i32) {
    %c0_i32 = arith.constant 0 : i32
    %c0_i32_0 = arith.constant 0 : i32
    %c0_i32_1 = arith.constant 0 : i32
    %c0_i32_2 = arith.constant 0 : i32
    return %c0_i32, %c0_i32_0, %c0_i32_1 : i32, i32, i32
  }
  func.func @transform_1(%arg0: i32) -> (i32, i32) {
    %c0_i32 = arith.constant 0 : i32
    %c0_i32_0 = arith.constant 0 : i32
    %c0_i32_1 = arith.constant 0 : i32
    return %c0_i32, %c0_i32_0 : i32, i32
  }
  func.func @transform_2(%arg0: i32) -> (i32, i32) {
    %c0_i32 = arith.constant 0 : i32
    %c0_i32_0 = arith.constant 0 : i32
    %c0_i32_1 = arith.constant 0 : i32
    return %c0_i32, %c0_i32_0 : i32, i32
  }
  func.func @transform_3(%arg0: i32) -> (i32, i32, i32) {
    %c0_i32 = arith.constant 0 : i32
    %c0_i32_0 = arith.constant 0 : i32
    %c0_i32_1 = arith.constant 0 : i32
    %c0_i32_2 = arith.constant 0 : i32
    return %c0_i32, %c0_i32_0, %c0_i32_1 : i32, i32, i32
  }
}

</mosaic_0001>

<llo_original>
// kernel: tpu_custom_call.1
$region0: #{tpu_custom_call.1}
  #allocation0 [shape = 'u32[]', space=smem, size = 0x4, offset = 0x4, fixed_abs, tag = 'smem constant byte address 0x4 - core index']
  #allocation1 [shape = 'u32[72,128]{1,0:T(1,128)}', space=vmem, size = 0x9000, scoped, tag = 'internal scratch']
  %s0 = inlined_call_operand.vmem [shape: f32[2,3,324], index: 0, kind: input, shape index: {}]
  %s1 = inlined_call_operand.vmem [shape: f32[8,3], index: 1, kind: input, shape index: {}]
  %s2 = inlined_call_operand.vmem [shape: f32[8,1], index: 2, kind: input, shape index: {}]
  %s3 = inlined_call_operand.hbm [shape: f32[2,8,324], index: 3, kind: output, shape index: {}]
  %s4 = sld [smem:[#allocation0]]
  $region22: #{tpu_custom_call.1} parent=0
    _
  %s6 = ssub.s32 1, %s4
  %s7 = scalar_select 0, %s6, %s4
  $region1: #{tpu_custom_call.1} parent=0
    #allocation2 [shape = 'u8[24576]{0}', space=vmem, size = 0x6000, scoped, tag = 'output window, operand 0, single buffered']
    #allocation3 [shape = 's32[1]{0}', space=sflag, size = 0x4, scoped, tag = 'scoped memory for tpu_custom_call.1']
    %8 = vsyncpa [#allocation3], 0
    // Predicated region
    $region2: #{tpu_custom_call.1} parent=1 // pred_check
      _
    $region3: #{tpu_custom_call.1} parent=1 // pred_check_branch
      %10 = sbr.rel (0) target = $region5
    $region4: #{tpu_custom_call.1} parent=1 // pred_region
      _
    $region5: #{tpu_custom_call.1} parent=1 // pred_fallthru
      _
    // Predicated region
    $region6: #{tpu_custom_call.1} parent=1 // pred_check
      _
    $region7: #{tpu_custom_call.1} parent=1 // pred_check_branch
      %12 = sbr.rel (0) target = $region9
    $region8: #{tpu_custom_call.1} parent=1 // pred_region
      _
    $region9: #{tpu_custom_call.1} parent=1 // pred_fallthru
      _
    // Predicated region
    $region10: #{tpu_custom_call.1} parent=1 // pred_check
      _
    $region11: #{tpu_custom_call.1} parent=1 // pred_check_branch
      %14 = sbr.rel (0) target = $region13
    $region12: #{tpu_custom_call.1} parent=1 // pred_region
      _
    $region13: #{tpu_custom_call.1} parent=1 // pred_fallthru
      _
    %v15 = vld [vmem:[%s0] sm:$0x77]
    %v16 = vld [vmem:[%s0 + $0x8] sm:$0x7]
    %v17 = vld [vmem:[%s0 + $0xc] sm:$0x77]
    %v18 = vld [vmem:[%s0 + $0x14] sm:$0x7]
    %v19 = vld [vmem:[%s1] sm:$0xff]
    %v20 = vld [vmem:[%s2] sm:$0xff]
    %v25 = vperm.slane %v15, 0
    %v26 = vperm.slane %v15, 4
    %v27 = vperm.slane %v16, 0
    %v28 = vperm.slane %v17, 0
    %v29 = vperm.slane %v17, 4
    %v30 = vperm.slane %v18, 0
    %v37 = vperm.slane %v25, 0
    %v38 = vperm.slane %v26, 0
    %v39 = vperm.slane %v27, 0
    %v40 = vperm.slane %v28, 0
    %v41 = vperm.slane %v29, 0
    %v42 = vperm.slane %v30, 0
    %44 = vset.pattern.permute.xlu0 0
    %45 = vperm.xlu0 %44, %v19
    %v46 = vpop.permute.xlu0 %45
    %v48 = vmul.f32 %v37, %v46
    %v49 = vmul.f32 %v38, %v46
    %v50 = vmul.f32 %v39, %v46
    %v51 = vmul.f32 %v40, %v46
    %v52 = vmul.f32 %v41, %v46
    %v53 = vmul.f32 %v42, %v46
    %55 = vset.pattern.permute.xlu0 0
    %56 = vperm.xlu0 %55, %v20
    %v57 = vpop.permute.xlu0 %56
    %v59 = vadd.f32 %v57, %v48
    %v60 = vadd.f32 %v57, %v49
    %v61 = vadd.f32 %v57, %v50
    %v62 = vadd.f32 %v57, %v51
    %v63 = vadd.f32 %v57, %v52
    %v64 = vadd.f32 %v57, %v53
    %v65 = vperm.slane %v15, 1
    %v66 = vperm.slane %v15, 5
    %v67 = vperm.slane %v16, 1
    %v68 = vperm.slane %v17, 1
    %v69 = vperm.slane %v17, 5
    %v70 = vperm.slane %v18, 1
    %v77 = vperm.slane %v65, 1
    %v78 = vperm.slane %v66, 1
    %v79 = vperm.slane %v67, 1
    %v80 = vperm.slane %v68, 1
    %v81 = vperm.slane %v69, 1
    %v82 = vperm.slane %v70, 1
    %83 = vset.pattern.permute.xlu0 1
    %84 = vperm.xlu0 %83, %v19
    %v85 = vpop.permute.xlu0 %84
    %v87 = vmul.f32 %v77, %v85
    %v88 = vmul.f32 %v78, %v85
    %v89 = vmul.f32 %v79, %v85
    %v90 = vmul.f32 %v80, %v85
    %v91 = vmul.f32 %v81, %v85
    %v92 = vmul.f32 %v82, %v85
    %v93 = vadd.f32 %v59, %v87
    %v94 = vadd.f32 %v60, %v88
    %v95 = vadd.f32 %v61, %v89
    %v96 = vadd.f32 %v62, %v90
    %v97 = vadd.f32 %v63, %v91
    %v98 = vadd.f32 %v64, %v92
    %v99 = vperm.slane %v15, 2
    %v100 = vperm.slane %v15, 6
    %v101 = vperm.slane %v16, 2
    %v102 = vperm.slane %v17, 2
    %v103 = vperm.slane %v17, 6
    %v104 = vperm.slane %v18, 2
    %v111 = vperm.slane %v99, 2
    %v112 = vperm.slane %v100, 2
    %v113 = vperm.slane %v101, 2
    %v114 = vperm.slane %v102, 2
    %v115 = vperm.slane %v103, 2
    %v116 = vperm.slane %v104, 2
    %117 = vset.pattern.permute.xlu0 2
    %118 = vperm.xlu0 %117, %v19
    %v119 = vpop.permute.xlu0 %118
    %v121 = vmul.f32 %v111, %v119
    %v122 = vmul.f32 %v112, %v119
    %v123 = vmul.f32 %v113, %v119
    %v124 = vmul.f32 %v114, %v119
    %v125 = vmul.f32 %v115, %v119
    %v126 = vmul.f32 %v116, %v119
    %v127 = vadd.f32 %v93, %v121
    %v128 = vadd.f32 %v94, %v122
    %v129 = vadd.f32 %v95, %v123
    %v130 = vadd.f32 %v96, %v124
    %v131 = vadd.f32 %v97, %v125
    %v132 = vadd.f32 %v98, %v126
    %v133 = vmax.f32 %v127, 0.0
    %v134 = vmax.f32 %v128, 0.0
    %v135 = vmax.f32 %v129, 0.0
    %v136 = vmax.f32 %v130, 0.0
    %v137 = vmax.f32 %v131, 0.0
    %v138 = vmax.f32 %v132, 0.0
    %v139 = vmin.f32 %v133, 6.0
    %v140 = vmin.f32 %v134, 6.0
    %v141 = vmin.f32 %v135, 6.0
    %v142 = vmin.f32 %v136, 6.0
    %v143 = vmin.f32 %v137, 6.0
    %v144 = vmin.f32 %v138, 6.0
    %v145 = vmul.f32 %v139, 0.16666667
    %v146 = vmul.f32 %v140, 0.16666667
    %v147 = vmul.f32 %v141, 0.16666667
    %v148 = vmul.f32 %v142, 0.16666667
    %v149 = vmul.f32 %v143, 0.16666667
    %v150 = vmul.f32 %v144, 0.16666667
    %151 = vst [vmem:[#allocation2] sm:$0xff] %v145
    %152 = vst [vmem:[#allocation2 + $0x8] sm:$0xff] %v146
    %vm153 = vcmask 556032
    %154 = vst.msk [vmem:[#allocation2 + $0x10] sm:$0xff] %vm153, %v147
    %155 = vst [vmem:[#allocation2 + $0x18] sm:$0xff] %v148
    %156 = vst [vmem:[#allocation2 + $0x20] sm:$0xff] %v149
    %157 = vst.msk [vmem:[#allocation2 + $0x28] sm:$0xff] %vm153, %v150
    // Predicated region
    $region14: #{tpu_custom_call.1} parent=1 // pred_check
      _
    $region15: #{tpu_custom_call.1} parent=1 // pred_check_branch
      %159 = sbr.rel (0) target = $region17
    $region16: #{tpu_custom_call.1} parent=1 // pred_region
      %161 = vsyncadd [#allocation3], 0
      %s162 = sshll.u32 [#allocation2], 4
      %s163 = int_to_ptr.vmem [resolvable:$true] %s162
      %s164 = sshll.u32 %s3, 4
      %s165 = int_to_ptr.hbm [resolvable:$true] %s164
      %170 = dma.vmem_to_hbm [thread:$0]  %s163, 768, %s165, [#allocation3], 384, 384, 24
    $region17: #{tpu_custom_call.1} parent=1 // pred_fallthru
      _
    // Predicated region
    $region18: #{tpu_custom_call.1} parent=1 // pred_check
      _
    $region19: #{tpu_custom_call.1} parent=1 // pred_check_branch
      %172 = sbr.rel (0) target = $region21
    $region20: #{tpu_custom_call.1} parent=1 // pred_region
      %174 = dma.done [#allocation3], 768
    $region21: #{tpu_custom_call.1} parent=1 // pred_fallthru
      _
    %175 = vsyncpa [#allocation3], 1

</llo_original>
